<compile_context>
chip_gen: v7x
topology: tpu7x:2x2x1
jax: 0.10.0
libtpu: 0.0.40
codegen_flags: <defaults>
</compile_context>

<pallas_src>
import jax
import jax.numpy as jnp
from jax.experimental import pallas as pl
from jax.experimental.pallas import tpu as pltpu

LANE = 128      # vreg lane width  -> last-dim alignment target
SUBLANE = 8     # vreg sublane cnt -> second-to-last-dim alignment target


def _round_up(n, m):
    return ((n + m - 1) // m) * m


def _actor_kernel(lim_ref, x_ref, w_ref, b_ref, o_ref):
    """Fused padded 3-layer MLP: relu(xW1+b1) -> relu(.W2+b2) -> tanh(.W3+b3)*lim."""
    lim = lim_ref[0, 0]                       # scalar from SMEM
    x = x_ref[...]                            # (TB, F)

    h = jnp.dot(x, w_ref[0], preferred_element_type=jnp.float32)
    h = jnp.maximum(h + b_ref[0:1, :], 0.0)

    h = jnp.dot(h, w_ref[1], preferred_element_type=jnp.float32)
    h = jnp.maximum(h + b_ref[1:2, :], 0.0)

    h = jnp.dot(h, w_ref[2], preferred_element_type=jnp.float32)
    o_ref[...] = (jnp.tanh(h + b_ref[2:3, :]) * lim).astype(o_ref.dtype)


def pack_actor_params(params):
    """Zero-pad each layer to a common lane-aligned width F and pack into slabs.

    Returns (w_stack (3,F,F), b_stack (3,F), F).  Padded rows/cols are exactly
    zero so padded lanes stay inert through ReLU/Tanh and slicing is exact.
    """
    s_dim = params["w1"].shape[0]
    hidden = params["w2"].shape[0]
    a_dim = params["w3"].shape[1]
    F = _round_up(max(s_dim, hidden, a_dim), LANE)

    def pad_w(w):
        out = jnp.zeros((F, F), jnp.float32)
        return out.at[: w.shape[0], : w.shape[1]].set(w.astype(jnp.float32))

    def pad_b(b):
        b = b.reshape(-1).astype(jnp.float32)
        return jnp.zeros((F,), jnp.float32).at[: b.shape[0]].set(b)

    w_stack = jnp.stack(
        [pad_w(params["w1"]), pad_w(params["w2"]), pad_w(params["w3"])])
    b_stack = jnp.stack(
        [pad_b(params["b1"]), pad_b(params["b2"]), pad_b(params["b3"])])
    return w_stack, b_stack, F


def actor_forward(x, w_stack, b_stack, lim, a_dim, *, block_batch=512):
    """x: (batch, s_dim) f32.  w_stack/b_stack from pack_actor_params."""
    batch, s_dim = x.shape
    F = w_stack.shape[-1]

    # Batch tiling: small batches collapse to a single (8, F) tile; large RL
    # batches get 512-row tiles (near HBM-roofline-friendly) pipelined by
    # BlockSpec double-buffering.  VMEM use per step stays tiny (<< 32 MiB).
    tb = min(block_batch, _round_up(batch, SUBLANE))
    batch_p = _round_up(batch, tb)

    x_p = jnp.zeros((batch_p, F), jnp.float32).at[:batch, :s_dim].set(
        x.astype(jnp.float32))
    lim_arr = jnp.asarray(lim, jnp.float32).reshape(1, 1)

    out = pl.pallas_call(
        _actor_kernel,
        out_shape=jax.ShapeDtypeStruct((batch_p, F), jnp.float32),
        grid=(batch_p // tb,),
        in_specs=[
            # lim scalar lives in SMEM (no recompile per value).
            pl.BlockSpec((1, 1), lambda i: (0, 0),
                         memory_space=pltpu.MemorySpace.SMEM),
            # activations: tiled over the batch grid.
            pl.BlockSpec((tb, F), lambda i: (i, 0)),
            # packed weights / biases: constant index_map => VMEM-resident.
            pl.BlockSpec((3, F, F), lambda i: (0, 0, 0)),
            pl.BlockSpec((3, F), lambda i: (0, 0)),
        ],
        out_specs=pl.BlockSpec((tb, F), lambda i: (i, 0)),
        compiler_params=pltpu.CompilerParams(
            dimension_semantics=("parallel",)),   # megacore split on v7x
    )(lim_arr, x_p, w_stack, b_stack)

    return out[:batch, :a_dim]


def init_actor_params(key, s_dim, hidden_dim, a_dim):
    """Deterministic init matching torch.nn.Linear's U(-1/sqrt(fan_in), +...)."""
    def linear(key, fan_in, fan_out):
        kw, kb = jax.random.split(key)
        bound = 1.0 / jnp.sqrt(fan_in)
        w = jax.random.uniform(kw, (fan_in, fan_out), jnp.float32, -bound, bound)
        b = jax.random.uniform(kb, (1, fan_out), jnp.float32, -bound, bound)
        return w, b

    k1, k2, k3 = jax.random.split(key, 3)
    w1, b1 = linear(k1, s_dim, hidden_dim)
    w2, b2 = linear(k2, hidden_dim, hidden_dim)
    w3, b3 = linear(k3, hidden_dim, a_dim)
    return dict(w1=w1, b1=b1, w2=w2, b2=b2, w3=w3, b3=b3)


if __name__ == "__main__":
    s_dim, hidden_dim, a_dim = 8, 32, 4
    batch = 2
    lim = 2.0

    key = jax.random.PRNGKey(0)
    k_params, k_x = jax.random.split(key)

    params = init_actor_params(k_params, s_dim, hidden_dim, a_dim)
    x = jax.random.normal(k_x, (batch, s_dim), dtype=jnp.float32)

    w_stack, b_stack, _ = pack_actor_params(params)
    out = actor_forward(x, w_stack, b_stack, lim, a_dim)
    out = jax.block_until_ready(out)

    # sanity check against plain-JAX reference
    h1 = jnp.maximum(x @ params["w1"] + params["b1"], 0.0)
    h2 = jnp.maximum(h1 @ params["w2"] + params["b2"], 0.0)
    ref = jnp.tanh(h2 @ params["w3"] + params["b3"]) * lim
    assert out.shape == (batch, a_dim)
    assert jnp.allclose(out, ref, atol=1e-5), "mismatch vs JAX reference"

    print("KERNEL_OK")
</pallas_src>

<mosaic_0001>
module attributes {stable_mosaic.version = 11 : i64} {
  func.func @_actor_kernel(%arg0: i32, %arg1: memref<1x1xf32, #tpu.memory_space<smem>>, %arg2: memref<8x128xf32, #tpu.memory_space<vmem>>, %arg3: memref<3x128x128xf32, #tpu.memory_space<vmem>>, %arg4: memref<3x128xf32, #tpu.memory_space<vmem>>, %arg5: memref<8x128xf32, #tpu.memory_space<vmem>>) attributes {dimension_semantics = [#tpu.dimension_semantics<parallel>], iteration_bounds = array<i64: 1>, scalar_prefetch = 0 : i64, scratch_operands = 0 : i64, tpu.core_type = #tpu.core_type<tc>, window_params = [{transform_indices = @transform_0, window_bounds = array<i64: 1, 1>}, {transform_indices = @transform_1, window_bounds = array<i64: 8, 128>}, {pipeline_mode = #tpu.pipeline_mode<synchronous>, transform_indices = @transform_2, window_bounds = array<i64: 3, 128, 128>}, {pipeline_mode = #tpu.pipeline_mode<synchronous>, transform_indices = @transform_3, window_bounds = array<i64: 3, 128>}, {transform_indices = @transform_4, window_bounds = array<i64: 8, 128>}]} {
    %c0 = arith.constant 0 : index
    %c0_0 = arith.constant 0 : index
    %0 = memref.load %arg1[%c0, %c0_0] : memref<1x1xf32, #tpu.memory_space<smem>>
    %c0_1 = arith.constant 0 : index
    %c0_2 = arith.constant 0 : index
    %1 = vector.load %arg2[%c0_1, %c0_2] : memref<8x128xf32, #tpu.memory_space<vmem>>, vector<8x128xf32>
    %c0_3 = arith.constant 0 : index
    %c0_4 = arith.constant 0 : index
    %c0_5 = arith.constant 0 : index
    %2 = vector.load %arg3[%c0_3, %c0_4, %c0_5] : memref<3x128x128xf32, #tpu.memory_space<vmem>>, vector<1x128x128xf32>
    %3 = vector.shape_cast %2 : vector<1x128x128xf32> to vector<128x128xf32>
    %cst = arith.constant dense<0.000000e+00> : vector<8x128xf32>
    %4 = tpu.matmul %1, %3, %cst {dimension_numbers = #tpu.dot_dimension_numbers<[1], [0], [0], [1], [0, 0, 1, 1], [], []>} : vector<8x128xf32>, vector<128x128xf32>, vector<8x128xf32> -> vector<8x128xf32>
    %c0_6 = arith.constant 0 : index
    %c0_7 = arith.constant 0 : index
    %5 = vector.load %arg4[%c0_6, %c0_7] : memref<3x128xf32, #tpu.memory_space<vmem>>, vector<1x128xf32>
    %6 = vector.broadcast %5 : vector<1x128xf32> to vector<8x128xf32>
    %7 = arith.addf %4, %6 : vector<8x128xf32>
    %cst_8 = arith.constant 0.000000e+00 : f32
    %8 = vector.broadcast %cst_8 : f32 to vector<8x128xf32>
    %9 = arith.maximumf %7, %8 : vector<8x128xf32>
    %c1 = arith.constant 1 : index
    %c0_9 = arith.constant 0 : index
    %c0_10 = arith.constant 0 : index
    %10 = vector.load %arg3[%c1, %c0_9, %c0_10] : memref<3x128x128xf32, #tpu.memory_space<vmem>>, vector<1x128x128xf32>
    %11 = vector.shape_cast %10 : vector<1x128x128xf32> to vector<128x128xf32>
    %cst_11 = arith.constant dense<0.000000e+00> : vector<8x128xf32>
    %12 = tpu.matmul %9, %11, %cst_11 {dimension_numbers = #tpu.dot_dimension_numbers<[1], [0], [0], [1], [0, 0, 1, 1], [], []>} : vector<8x128xf32>, vector<128x128xf32>, vector<8x128xf32> -> vector<8x128xf32>
    %c1_12 = arith.constant 1 : index
    %c0_13 = arith.constant 0 : index
    %13 = vector.load %arg4[%c1_12, %c0_13] : memref<3x128xf32, #tpu.memory_space<vmem>>, vector<1x128xf32>
    %14 = vector.broadcast %13 : vector<1x128xf32> to vector<8x128xf32>
    %15 = arith.addf %12, %14 : vector<8x128xf32>
    %cst_14 = arith.constant 0.000000e+00 : f32
    %16 = vector.broadcast %cst_14 : f32 to vector<8x128xf32>
    %17 = arith.maximumf %15, %16 : vector<8x128xf32>
    %c2 = arith.constant 2 : index
    %c0_15 = arith.constant 0 : index
    %c0_16 = arith.constant 0 : index
    %18 = vector.load %arg3[%c2, %c0_15, %c0_16] : memref<3x128x128xf32, #tpu.memory_space<vmem>>, vector<1x128x128xf32>
    %19 = vector.shape_cast %18 : vector<1x128x128xf32> to vector<128x128xf32>
    %cst_17 = arith.constant dense<0.000000e+00> : vector<8x128xf32>
    %20 = tpu.matmul %17, %19, %cst_17 {dimension_numbers = #tpu.dot_dimension_numbers<[1], [0], [0], [1], [0, 0, 1, 1], [], []>} : vector<8x128xf32>, vector<128x128xf32>, vector<8x128xf32> -> vector<8x128xf32>
    %c2_18 = arith.constant 2 : index
    %c0_19 = arith.constant 0 : index
    %21 = vector.load %arg4[%c2_18, %c0_19] : memref<3x128xf32, #tpu.memory_space<vmem>>, vector<1x128xf32>
    %22 = vector.broadcast %21 : vector<1x128xf32> to vector<8x128xf32>
    %23 = arith.addf %20, %22 : vector<8x128xf32>
    %24 = math.tanh %23 : vector<8x128xf32>
    %25 = vector.broadcast %0 : f32 to vector<8x128xf32>
    %26 = arith.mulf %24, %25 : vector<8x128xf32>
    %c0_20 = arith.constant 0 : index
    %c0_21 = arith.constant 0 : index
    %27 = vector.load %arg5[%c0_20, %c0_21] : memref<8x128xf32, #tpu.memory_space<vmem>>, vector<8x128xf32>
    tpu.vector_store %arg5[%c0_20, %c0_21], %26 {strides = array<i32>} : memref<8x128xf32, #tpu.memory_space<vmem>>, vector<8x128xf32>,
    return
  }
  func.func @transform_0(%arg0: i32) -> (i32, i32) {
    %c0_i32 = arith.constant 0 : i32
    %c0_i32_0 = arith.constant 0 : i32
    %c0_i32_1 = arith.constant 0 : i32
    return %c0_i32, %c0_i32_0 : i32, i32
  }
  func.func @transform_1(%arg0: i32) -> (i32, i32) {
    %c0_i32 = arith.constant 0 : i32
    %c0_i32_0 = arith.constant 0 : i32
    return %arg0, %c0_i32 : i32, i32
  }
  func.func @transform_2(%arg0: i32) -> (i32, i32, i32) {
    %c0_i32 = arith.constant 0 : i32
    %c0_i32_0 = arith.constant 0 : i32
    %c0_i32_1 = arith.constant 0 : i32
    %c0_i32_2 = arith.constant 0 : i32
    return %c0_i32, %c0_i32_0, %c0_i32_1 : i32, i32, i32
  }
  func.func @transform_3(%arg0: i32) -> (i32, i32) {
    %c0_i32 = arith.constant 0 : i32
    %c0_i32_0 = arith.constant 0 : i32
    %c0_i32_1 = arith.constant 0 : i32
    return %c0_i32, %c0_i32_0 : i32, i32
  }
  func.func @transform_4(%arg0: i32) -> (i32, i32) {
    %c0_i32 = arith.constant 0 : i32
    %c0_i32_0 = arith.constant 0 : i32
    return %arg0, %c0_i32 : i32, i32
  }
}

</mosaic_0001>

<llo_original>
// kernel: tpu_custom_call.1
$region0: #{tpu_custom_call.1}
  #allocation0 [shape = 'u32[]', space=smem, size = 0x4, offset = 0x4, fixed_abs, tag = 'smem constant byte address 0x4 - core index']
  #allocation1 [shape = 'u32[144,128]{1,0:T(1,128)}', space=vmem, size = 0x12000, scoped, tag = 'internal scratch']
  #allocation2 [shape = 'f32[1,1]{1,0:T(1,128)S(6)}', space=smem, size = 0x200, scoped, tag = 'scoped memory for tpu_custom_call.1']
  %s0 = inlined_call_operand.<no memory space> [shape: f32[1,1], index: 0, kind: input, shape index: {}]
  %s1 = inlined_call_operand.hbm [shape: f32[8,128], index: 1, kind: input, shape index: {}]
  %s2 = inlined_call_operand.hbm [shape: f32[3,128,128], index: 2, kind: input, shape index: {}]
  %s3 = inlined_call_operand.vmem [shape: f32[3,128], index: 3, kind: input, shape index: {}]
  %s4 = inlined_call_operand.hbm [shape: f32[8,128], index: 4, kind: output, shape index: {}]
  %s5 = sld [smem:[#allocation0]]
  $region34: #{tpu_custom_call.1} parent=0
    _
  %s7 = ssub.s32 1, %s5
  %s8 = scalar_select 0, %s7, %s5
  %9 = sst [smem:[#allocation2]] %s0
  $region1: #{tpu_custom_call.1} parent=0
    #allocation3 [shape = 'u8[4096]{0}', space=vmem, size = 0x1000, scoped, tag = 'input window, operand 1, single buffered']
    #allocation4 [shape = 's32[1]{0}', space=sflag, size = 0x4, scoped, tag = 'scoped memory for tpu_custom_call.1']
    #allocation5 [shape = 's32[1]{0}', space=sflag, size = 0x4, scoped, tag = 'scoped memory for tpu_custom_call.1']
    #allocation6 [shape = 'u8[196608]{0}', space=vmem, size = 0x30000, scoped, tag = 'input window, operand 2, single buffered']
    #allocation7 [shape = 's32[1]{0}', space=sflag, size = 0x4, scoped, tag = 'scoped memory for tpu_custom_call.1']
    #allocation8 [shape = 'u8[4096]{0}', space=vmem, size = 0x1000, scoped, tag = 'output window, operand 0, single buffered']
    %10 = vsyncpa [#allocation4], 0
    %11 = vsyncpa [#allocation7], 0
    %12 = vsyncpa [#allocation5], 0
    // Predicated region
    $region2: #{tpu_custom_call.1} parent=1 // pred_check
      _
    $region3: #{tpu_custom_call.1} parent=1 // pred_check_branch
      %14 = sbr.rel (0) target = $region5
    $region4: #{tpu_custom_call.1} parent=1 // pred_region
      _
    $region5: #{tpu_custom_call.1} parent=1 // pred_fallthru
      _
    // Predicated region
    $region6: #{tpu_custom_call.1} parent=1 // pred_check
      _
    $region7: #{tpu_custom_call.1} parent=1 // pred_check_branch
      %16 = sbr.rel (0) target = $region9
    $region8: #{tpu_custom_call.1} parent=1 // pred_region
      %s18 = ssub.s32 128, 128
      %19 = vsyncadd [#allocation4], %s18
      %s21 = sshll.u32 [#allocation3], 4
      %s22 = int_to_ptr.vmem [resolvable:$true] %s21
      %24 = dma.hbm_to_vmem [thread:$0]  %s1, 128, %s22, [#allocation4]
    $region9: #{tpu_custom_call.1} parent=1 // pred_fallthru
      _
    // Predicated region
    $region10: #{tpu_custom_call.1} parent=1 // pred_check
      _
    $region11: #{tpu_custom_call.1} parent=1 // pred_check_branch
      %26 = sbr.rel (0) target = $region13
    $region12: #{tpu_custom_call.1} parent=1 // pred_region
      %s28 = ssub.s32 6144, 6144
      %29 = vsyncadd [#allocation7], %s28
      %s30 = sshll.u32 [#allocation6], 4
      %s31 = int_to_ptr.vmem [resolvable:$true] %s30
      %36 = dma.hbm_to_vmem [thread:$0]  %s2, 6144, %s31, [#allocation7], 128, 128, 8
    $region13: #{tpu_custom_call.1} parent=1 // pred_fallthru
      _
    // Predicated region
    $region14: #{tpu_custom_call.1} parent=1 // pred_check
      _
    $region15: #{tpu_custom_call.1} parent=1 // pred_check_branch
      %38 = sbr.rel (0) target = $region17
    $region16: #{tpu_custom_call.1} parent=1 // pred_region
      _
    $region17: #{tpu_custom_call.1} parent=1 // pred_fallthru
      _
    // Predicated region
    $region18: #{tpu_custom_call.1} parent=1 // pred_check
      _
    $region19: #{tpu_custom_call.1} parent=1 // pred_check_branch
      %40 = sbr.rel (0) target = $region21
    $region20: #{tpu_custom_call.1} parent=1 // pred_region
      %41 = dma.done [#allocation4], 128
    $region21: #{tpu_custom_call.1} parent=1 // pred_fallthru
      _
    // Predicated region
    $region22: #{tpu_custom_call.1} parent=1 // pred_check
      _
    $region23: #{tpu_custom_call.1} parent=1 // pred_check_branch
      %43 = sbr.rel (0) target = $region25
    $region24: #{tpu_custom_call.1} parent=1 // pred_region
      %44 = dma.done [#allocation7], 6144
    $region25: #{tpu_custom_call.1} parent=1 // pred_fallthru
      _
    %s45 = sld [smem:[#allocation2]]
    %v46 = vld [vmem:[#allocation3] sm:$0xff]
    %v47 = vld [vmem:[#allocation6] sm:$0xff]
    %v48 = vld [vmem:[#allocation6 + $0x8] sm:$0xff]
    %v49 = vld [vmem:[#allocation6 + $0x10] sm:$0xff]
    %v50 = vld [vmem:[#allocation6 + $0x18] sm:$0xff]
    %v51 = vld [vmem:[#allocation6 + $0x20] sm:$0xff]
    %v52 = vld [vmem:[#allocation6 + $0x28] sm:$0xff]
    %v53 = vld [vmem:[#allocation6 + $0x30] sm:$0xff]
    %v54 = vld [vmem:[#allocation6 + $0x38] sm:$0xff]
    %v55 = vld [vmem:[#allocation6 + $0x40] sm:$0xff]
    %v56 = vld [vmem:[#allocation6 + $0x48] sm:$0xff]
    %v57 = vld [vmem:[#allocation6 + $0x50] sm:$0xff]
    %v58 = vld [vmem:[#allocation6 + $0x58] sm:$0xff]
    %v59 = vld [vmem:[#allocation6 + $0x60] sm:$0xff]
    %v60 = vld [vmem:[#allocation6 + $0x68] sm:$0xff]
    %v61 = vld [vmem:[#allocation6 + $0x70] sm:$0xff]
    %v62 = vld [vmem:[#allocation6 + $0x78] sm:$0xff]
    %v63 = vld [vmem:[%s3] sm:$0x1]
    %v64 = vlaneseq
    %v65 = vshrl.u32 %v64, 7
    %v66 = vsub.s32 0, %v65
    %v67 = vrot.slane %v63, %v66
    %68 = vmatprep.subr.mxu0 0.0
    %69 = vmatpush1.msra.mxu0 %v47
    %70 = vmatprep.subr.mxu0 0.0
    %71 = vmatpush1.msra.mxu0 %v48
    %72 = vmatprep.subr.mxu0 0.0
    %73 = vmatpush1.msra.mxu0 %v49
    %74 = vmatprep.subr.mxu0 0.0
    %75 = vmatpush1.msra.mxu0 %v50
    %76 = vmatprep.subr.mxu0 0.0
    %77 = vmatpush1.msra.mxu0 %v51
    %78 = vmatprep.subr.mxu0 0.0
    %79 = vmatpush1.msra.mxu0 %v52
    %80 = vmatprep.subr.mxu0 0.0
    %81 = vmatpush1.msra.mxu0 %v53
    %82 = vmatprep.subr.mxu0 0.0
    %83 = vmatpush1.msra.mxu0 %v54
    %84 = vmatprep.subr.mxu0 0.0
    %85 = vmatpush1.msra.mxu0 %v55
    %86 = vmatprep.subr.mxu0 0.0
    %87 = vmatpush1.msra.mxu0 %v56
    %88 = vmatprep.subr.mxu0 0.0
    %89 = vmatpush1.msra.mxu0 %v57
    %90 = vmatprep.subr.mxu0 0.0
    %91 = vmatpush1.msra.mxu0 %v58
    %92 = vmatprep.subr.mxu0 0.0
    %93 = vmatpush1.msra.mxu0 %v59
    %94 = vmatprep.subr.mxu0 0.0
    %95 = vmatpush1.msra.mxu0 %v60
    %96 = vmatprep.subr.mxu0 0.0
    %97 = vmatpush1.msra.mxu0 %v61
    %98 = vmatprep.subr.mxu0 0.0
    %99 = vmatpush1.msra.mxu0 %v62
    %100 = vmatprep.subr.mxu0 0.0
    %101 = vmatpush1.msra.mxu0 0.0
    %102 = vmatprep.subr.mxu0 0.0
    %103 = vmatpush1.msra.mxu0 0.0
    %104 = vmatprep.subr.mxu0 0.0
    %105 = vmatpush1.msra.mxu0 0.0
    %106 = vmatprep.subr.mxu0 0.0
    %107 = vmatpush1.msra.mxu0 0.0
    %108 = vmatprep.subr.mxu0 0.0
    %109 = vmatpush1.msra.mxu0 0.0
    %110 = vmatprep.subr.mxu0 0.0
    %111 = vmatpush1.msra.mxu0 0.0
    %112 = vmatprep.subr.mxu0 0.0
    %113 = vmatpush1.msra.mxu0 0.0
    %114 = vmatprep.subr.mxu0 0.0
    %115 = vmatpush1.msra.mxu0 0.0
    %116 = vmatprep.subr.mxu0 0.0
    %117 = vmatpush1.msra.mxu0 0.0
    %118 = vmatprep.subr.mxu0 0.0
    %119 = vmatpush1.msra.mxu0 0.0
    %120 = vmatprep.subr.mxu0 0.0
    %121 = vmatpush1.msra.mxu0 0.0
    %122 = vmatprep.subr.mxu0 0.0
    %123 = vmatpush1.msra.mxu0 0.0
    %124 = vmatprep.subr.mxu0 0.0
    %125 = vmatpush1.msra.mxu0 0.0
    %126 = vmatprep.subr.mxu0 0.0
    %127 = vmatpush1.msra.mxu0 0.0
    %128 = vmatprep.subr.mxu0 0.0
    %129 = vmatpush1.msra.mxu0 0.0
    %130 = vmatprep.subr.mxu0 0.0
    %131 = vmatpush1.msra.mxu0 0.0
    %132 = vmatprep.mubr.f32.mxu0 0.0
    %133 = vmatmul.mubr.f32.gmra.mrb[0].mxu0 %v46
    %v134 = vpop.f32.mrb[0].mxu0
    %v135 = vadd.f32 %v67, %v134
    %v136 = vpop.f32.mrb[0].mxu0
    %137 = vdwg.mxu0
    %v138 = vmax.f32 %v135, 0.0
    %s139 = scalar_lea.vmem [#allocation6], 128
    %v140 = vld [vmem:[%s139] sm:$0xff]
    %v141 = vld [vmem:[%s139 + $0x8] sm:$0xff]
    %v142 = vld [vmem:[%s139 + $0x10] sm:$0xff]
    %v143 = vld [vmem:[%s139 + $0x18] sm:$0xff]
    %v144 = vld [vmem:[%s139 + $0x20] sm:$0xff]
    %v145 = vld [vmem:[%s139 + $0x28] sm:$0xff]
    %v146 = vld [vmem:[%s139 + $0x30] sm:$0xff]
    %v147 = vld [vmem:[%s139 + $0x38] sm:$0xff]
    %v148 = vld [vmem:[%s139 + $0x40] sm:$0xff]
    %v149 = vld [vmem:[%s139 + $0x48] sm:$0xff]
    %v150 = vld [vmem:[%s139 + $0x50] sm:$0xff]
    %v151 = vld [vmem:[%s139 + $0x58] sm:$0xff]
    %v152 = vld [vmem:[%s139 + $0x60] sm:$0xff]
    %v153 = vld [vmem:[%s139 + $0x68] sm:$0xff]
    %v154 = vld [vmem:[%s139 + $0x70] sm:$0xff]
    %v155 = vld [vmem:[%s139 + $0x78] sm:$0xff]
    %v156 = vld [vmem:[%s3 + $0x1] sm:$0x1]
    %v157 = vlaneseq
    %v158 = vshrl.u32 %v157, 7
    %v159 = vsub.s32 0, %v158
    %v160 = vrot.slane %v156, %v159
    %161 = vmatprep.subr.mxu0 0.0
    %162 = vmatpush1.msra.mxu0 %v140
    %163 = vmatprep.subr.mxu0 0.0
    %164 = vmatpush1.msra.mxu0 %v141
    %165 = vmatprep.subr.mxu0 0.0
    %166 = vmatpush1.msra.mxu0 %v142
    %167 = vmatprep.subr.mxu0 0.0
    %168 = vmatpush1.msra.mxu0 %v143
    %169 = vmatprep.subr.mxu0 0.0
    %170 = vmatpush1.msra.mxu0 %v144
    %171 = vmatprep.subr.mxu0 0.0
    %172 = vmatpush1.msra.mxu0 %v145
    %173 = vmatprep.subr.mxu0 0.0
    %174 = vmatpush1.msra.mxu0 %v146
    %175 = vmatprep.subr.mxu0 0.0
    %176 = vmatpush1.msra.mxu0 %v147
    %177 = vmatprep.subr.mxu0 0.0
    %178 = vmatpush1.msra.mxu0 %v148
    %179 = vmatprep.subr.mxu0 0.0
    %180 = vmatpush1.msra.mxu0 %v149
    %181 = vmatprep.subr.mxu0 0.0
    %182 = vmatpush1.msra.mxu0 %v150
    %183 = vmatprep.subr.mxu0 0.0
    %184 = vmatpush1.msra.mxu0 %v151
    %185 = vmatprep.subr.mxu0 0.0
    %186 = vmatpush1.msra.mxu0 %v152
    %187 = vmatprep.subr.mxu0 0.0
    %188 = vmatpush1.msra.mxu0 %v153
    %189 = vmatprep.subr.mxu0 0.0
    %190 = vmatpush1.msra.mxu0 %v154
    %191 = vmatprep.subr.mxu0 0.0
    %192 = vmatpush1.msra.mxu0 %v155
    %193 = vmatprep.subr.mxu0 0.0
    %194 = vmatpush1.msra.mxu0 0.0
    %195 = vmatprep.subr.mxu0 0.0
    %196 = vmatpush1.msra.mxu0 0.0
    %197 = vmatprep.subr.mxu0 0.0
    %198 = vmatpush1.msra.mxu0 0.0
    %199 = vmatprep.subr.mxu0 0.0
    %200 = vmatpush1.msra.mxu0 0.0
    %201 = vmatprep.subr.mxu0 0.0
    %202 = vmatpush1.msra.mxu0 0.0
    %203 = vmatprep.subr.mxu0 0.0
    %204 = vmatpush1.msra.mxu0 0.0
    %205 = vmatprep.subr.mxu0 0.0
    %206 = vmatpush1.msra.mxu0 0.0
    %207 = vmatprep.subr.mxu0 0.0
    %208 = vmatpush1.msra.mxu0 0.0
    %209 = vmatprep.subr.mxu0 0.0
    %210 = vmatpush1.msra.mxu0 0.0
    %211 = vmatprep.subr.mxu0 0.0
    %212 = vmatpush1.msra.mxu0 0.0
    %213 = vmatprep.subr.mxu0 0.0
    %214 = vmatpush1.msra.mxu0 0.0
    %215 = vmatprep.subr.mxu0 0.0
    %216 = vmatpush1.msra.mxu0 0.0
    %217 = vmatprep.subr.mxu0 0.0
    %218 = vmatpush1.msra.mxu0 0.0
    %219 = vmatprep.subr.mxu0 0.0
    %220 = vmatpush1.msra.mxu0 0.0
    %221 = vmatprep.subr.mxu0 0.0
    %222 = vmatpush1.msra.mxu0 0.0
    %223 = vmatprep.subr.mxu0 0.0
    %224 = vmatpush1.msra.mxu0 0.0
    %225 = vmatprep.mubr.f32.mxu0 0.0
    %226 = vmatmul.mubr.f32.gmra.mrb[0].mxu0 %v138
    %v227 = vpop.f32.mrb[0].mxu0
    %v228 = vadd.f32 %v160, %v227
    %v229 = vpop.f32.mrb[0].mxu0
    %230 = vdwg.mxu0
    %v231 = vmax.f32 %v228, 0.0
    %s232 = scalar_lea.vmem [#allocation6], 256
    %v233 = vld [vmem:[%s232] sm:$0xff]
    %v234 = vld [vmem:[%s232 + $0x8] sm:$0xff]
    %v235 = vld [vmem:[%s232 + $0x10] sm:$0xff]
    %v236 = vld [vmem:[%s232 + $0x18] sm:$0xff]
    %v237 = vld [vmem:[%s232 + $0x20] sm:$0xff]
    %v238 = vld [vmem:[%s232 + $0x28] sm:$0xff]
    %v239 = vld [vmem:[%s232 + $0x30] sm:$0xff]
    %v240 = vld [vmem:[%s232 + $0x38] sm:$0xff]
    %v241 = vld [vmem:[%s232 + $0x40] sm:$0xff]
    %v242 = vld [vmem:[%s232 + $0x48] sm:$0xff]
    %v243 = vld [vmem:[%s232 + $0x50] sm:$0xff]
    %v244 = vld [vmem:[%s232 + $0x58] sm:$0xff]
    %v245 = vld [vmem:[%s232 + $0x60] sm:$0xff]
    %v246 = vld [vmem:[%s232 + $0x68] sm:$0xff]
    %v247 = vld [vmem:[%s232 + $0x70] sm:$0xff]
    %v248 = vld [vmem:[%s232 + $0x78] sm:$0xff]
    %v249 = vld [vmem:[%s3 + $0x2] sm:$0x1]
    %v250 = vlaneseq
    %v251 = vshrl.u32 %v250, 7
    %v252 = vsub.s32 0, %v251
    %v253 = vrot.slane %v249, %v252
    %254 = vmatprep.subr.mxu0 0.0
    %255 = vmatpush1.msra.mxu0 %v233
    %256 = vmatprep.subr.mxu0 0.0
    %257 = vmatpush1.msra.mxu0 %v234
    %258 = vmatprep.subr.mxu0 0.0
    %259 = vmatpush1.msra.mxu0 %v235
    %260 = vmatprep.subr.mxu0 0.0
    %261 = vmatpush1.msra.mxu0 %v236
    %262 = vmatprep.subr.mxu0 0.0
    %263 = vmatpush1.msra.mxu0 %v237
    %264 = vmatprep.subr.mxu0 0.0
    %265 = vmatpush1.msra.mxu0 %v238
    %266 = vmatprep.subr.mxu0 0.0
    %267 = vmatpush1.msra.mxu0 %v239
    %268 = vmatprep.subr.mxu0 0.0
    %269 = vmatpush1.msra.mxu0 %v240
    %270 = vmatprep.subr.mxu0 0.0
    %271 = vmatpush1.msra.mxu0 %v241
    %272 = vmatprep.subr.mxu0 0.0
    %273 = vmatpush1.msra.mxu0 %v242
    %274 = vmatprep.subr.mxu0 0.0
    %275 = vmatpush1.msra.mxu0 %v243
    %276 = vmatprep.subr.mxu0 0.0
    %277 = vmatpush1.msra.mxu0 %v244
    %278 = vmatprep.subr.mxu0 0.0
    %279 = vmatpush1.msra.mxu0 %v245
    %280 = vmatprep.subr.mxu0 0.0
    %281 = vmatpush1.msra.mxu0 %v246
    %282 = vmatprep.subr.mxu0 0.0
    %283 = vmatpush1.msra.mxu0 %v247
    %284 = vmatprep.subr.mxu0 0.0
    %285 = vmatpush1.msra.mxu0 %v248
    %286 = vmatprep.subr.mxu0 0.0
    %287 = vmatpush1.msra.mxu0 0.0
    %288 = vmatprep.subr.mxu0 0.0
    %289 = vmatpush1.msra.mxu0 0.0
    %290 = vmatprep.subr.mxu0 0.0
    %291 = vmatpush1.msra.mxu0 0.0
    %292 = vmatprep.subr.mxu0 0.0
    %293 = vmatpush1.msra.mxu0 0.0
    %294 = vmatprep.subr.mxu0 0.0
    %295 = vmatpush1.msra.mxu0 0.0
    %296 = vmatprep.subr.mxu0 0.0
    %297 = vmatpush1.msra.mxu0 0.0
    %298 = vmatprep.subr.mxu0 0.0
    %299 = vmatpush1.msra.mxu0 0.0
    %300 = vmatprep.subr.mxu0 0.0
    %301 = vmatpush1.msra.mxu0 0.0
    %302 = vmatprep.subr.mxu0 0.0
    %303 = vmatpush1.msra.mxu0 0.0
    %304 = vmatprep.subr.mxu0 0.0
    %305 = vmatpush1.msra.mxu0 0.0
    %306 = vmatprep.subr.mxu0 0.0
    %307 = vmatpush1.msra.mxu0 0.0
    %308 = vmatprep.subr.mxu0 0.0
    %309 = vmatpush1.msra.mxu0 0.0
    %310 = vmatprep.subr.mxu0 0.0
    %311 = vmatpush1.msra.mxu0 0.0
    %312 = vmatprep.subr.mxu0 0.0
    %313 = vmatpush1.msra.mxu0 0.0
    %314 = vmatprep.subr.mxu0 0.0
    %315 = vmatpush1.msra.mxu0 0.0
    %316 = vmatprep.subr.mxu0 0.0
    %317 = vmatpush1.msra.mxu0 0.0
    %318 = vmatprep.mubr.f32.mxu0 0.0
    %319 = vmatmul.mubr.f32.gmra.mrb[0].mxu0 %v231
    %v320 = vpop.f32.mrb[0].mxu0
    %v321 = vadd.f32 %v253, %v320
    %v322 = vpop.f32.mrb[0].mxu0
    %323 = vdwg.mxu0
    %v324 = vtanh.pop %v321
    %v325 = vstv %s45
    %v326 = vmul.f32 %v324, %v325
    %327 = vst [vmem:[#allocation8] sm:$0xff] %v326
    // Predicated region
    $region26: #{tpu_custom_call.1} parent=1 // pred_check
      _
    $region27: #{tpu_custom_call.1} parent=1 // pred_check_branch
      %329 = sbr.rel (0) target = $region29
    $region28: #{tpu_custom_call.1} parent=1 // pred_region
      %s331 = ssub.s32 128, 128
      %332 = vsyncadd [#allocation5], %s331
      %s334 = sshll.u32 [#allocation8], 4
      %s335 = int_to_ptr.vmem [resolvable:$true] %s334
      %337 = dma.vmem_to_hbm [thread:$0]  %s335, 128, %s4, [#allocation5]
    $region29: #{tpu_custom_call.1} parent=1 // pred_fallthru
      _
    // Predicated region
    $region30: #{tpu_custom_call.1} parent=1 // pred_check
      _
    $region31: #{tpu_custom_call.1} parent=1 // pred_check_branch
      %339 = sbr.rel (0) target = $region33
    $region32: #{tpu_custom_call.1} parent=1 // pred_region
      %340 = dma.done [#allocation5], 128
    $region33: #{tpu_custom_call.1} parent=1 // pred_fallthru
      _
    %341 = vsyncpa [#allocation4], 1
    %342 = vsyncpa [#allocation7], 1
    %343 = vsyncpa [#allocation5], 1

</llo_original>
